<compile_context>
chip_gen: v7x
topology: tpu7x:2x2x1
jax: 0.10.0
libtpu: 0.0.40
codegen_flags: <defaults>
</compile_context>

<pallas_src>
import functools

import jax
import jax.numpy as jnp
from jax.experimental import pallas as pl
from jax.experimental.pallas import tpu as pltpu


def _round_up(x: int, m: int) -> int:
    return (x + m - 1) // m * m


def _contrastive_kernel(emb1_ref, emb2_ref, lab_ref, out_ref, *, margin, inv_batch):
    # Cast to f32 right after the load (inputs may be bf16; v5e VPU has no
    # bf16 ALUs). The kernel is HBM-bandwidth bound, so compute stays simple:
    # VPU elementwise, XLU cross-lane reduce, EUP sqrt.
    e1 = emb1_ref[...].astype(jnp.float32)                     # (TB, D)
    e2 = emb2_ref[...].astype(jnp.float32)                     # (TB, D)
    diff = e1 - e2
    sqdist = jnp.sum(diff * diff, axis=1, keepdims=True)       # (TB, 1) = dists^2
    dists = jnp.sqrt(sqdist)                                   # (TB, 1)

    labels = lab_ref[...]                                      # (TB, 1) f32
    pos = labels * sqdist
    hinge = jnp.maximum(margin - dists, 0.0)
    neg = (1.0 - labels) * hinge * hinge
    tile_sum = jnp.sum(pos + neg)

    # Init / accumulate / finalize phases over the "arbitrary" batch-tile axis.
    @pl.when(pl.program_id(0) == 0)
    def _():
        out_ref[0, 0] = 0.0

    out_ref[0, 0] += tile_sum

    @pl.when(pl.program_id(0) == pl.num_programs(0) - 1)
    def _():
        out_ref[0, 0] = out_ref[0, 0] * inv_batch


def contrastive_loss(emb1, emb2, labels, margin=1.0, tile_rows=512):
    """emb1, emb2: (B, D) float (any float dtype); labels: (B,). Returns f32 scalar."""
    B, D = emb1.shape
    labels2d = labels.reshape(B, 1).astype(jnp.float32)

    # Tile rows: multiple of 8 (sublane), at most `tile_rows` (~512 targets
    # the measured ~85%-of-roofline point for streaming kernels).
    TB = min(_round_up(tile_rows, 8), _round_up(B, 8))
    Bp = _round_up(B, TB)
    if Bp != B:
        pad = Bp - B
        emb1 = jnp.pad(emb1, ((0, pad), (0, 0)))
        emb2 = jnp.pad(emb2, ((0, pad), (0, 0)))
        # Padded rows: zero embeddings (dist = 0) with label = 1.0 -> pos = 0,
        # neg = 0, so they add nothing to the sum.
        labels2d = jnp.pad(labels2d, ((0, pad), (0, 0)), constant_values=1.0)

    grid = (Bp // TB,)

    # VMEM budget: 2 pipeline buffers x (two embedding tiles + label tile).
    itemsize = jnp.dtype(emb1.dtype).itemsize
    tile_bytes = 2 * (2 * TB * D * itemsize + TB * 4)
    vmem_limit = int(min(max(2 * tile_bytes, 16 * 1024 * 1024), 48 * 1024 * 1024))

    kernel = functools.partial(
        _contrastive_kernel, margin=float(margin), inv_batch=1.0 / float(B)
    )

    out = pl.pallas_call(
        kernel,
        out_shape=jax.ShapeDtypeStruct((1, 1), jnp.float32),
        grid=grid,
        in_specs=[
            pl.BlockSpec((TB, D), lambda i: (i, 0)),   # emb1 tile (native dtype)
            pl.BlockSpec((TB, D), lambda i: (i, 0)),   # emb2 tile (native dtype)
            pl.BlockSpec((TB, 1), lambda i: (i, 0)),   # labels tile (f32)
        ],
        out_specs=pl.BlockSpec(memory_space=pltpu.SMEM),  # resident scalar accumulator
        compiler_params=pltpu.CompilerParams(
            dimension_semantics=("arbitrary",),
            vmem_limit_bytes=vmem_limit,
        ),
    )(emb1, emb2, labels2d)
    return out[0, 0]


def _reference(emb1, emb2, labels, margin=1.0):
    emb1 = emb1.astype(jnp.float32)
    emb2 = emb2.astype(jnp.float32)
    dists = jnp.linalg.norm(emb1 - emb2, axis=1)
    pos = labels * dists**2
    neg = (1.0 - labels) * jnp.maximum(margin - dists, 0.0) ** 2
    return jnp.mean(pos + neg)


if __name__ == "__main__":
    key = jax.random.PRNGKey(0)
    k1, k2, k3, k4, k5, k6 = jax.random.split(key, 6)

    # Small f32 case (single tile).
    B, D = 8, 32
    emb1 = jax.random.normal(k1, (B, D), dtype=jnp.float32)
    emb2 = jax.random.normal(k2, (B, D), dtype=jnp.float32)
    labels = jax.random.bernoulli(k3, 0.5, (B,)).astype(jnp.float32)

    loss = contrastive_loss(emb1, emb2, labels, margin=1.0)
    jax.block_until_ready(loss)
    ref = _reference(emb1, emb2, labels, margin=1.0)
    assert jnp.allclose(loss, ref, rtol=1e-5, atol=1e-5), (loss, ref)

    # Multi-tile + padding case (B not a multiple of the tile), bf16 inputs
    # fed natively to the kernel.
    B2, D2 = 20, 32
    e1b = jax.random.normal(k4, (B2, D2), dtype=jnp.float32)
    e2b = jax.random.normal(k5, (B2, D2), dtype=jnp.float32)
    lb = jax.random.bernoulli(k6, 0.5, (B2,)).astype(jnp.float32)

    loss2 = contrastive_loss(
        e1b.astype(jnp.bfloat16), e2b.astype(jnp.bfloat16), lb, margin=1.0, tile_rows=8
    )
    jax.block_until_ready(loss2)
    ref2 = _reference(e1b.astype(jnp.bfloat16), e2b.astype(jnp.bfloat16), lb, margin=1.0)
    assert jnp.allclose(loss2, ref2, rtol=2e-2, atol=2e-2), (loss2, ref2)

    print("KERNEL_OK")
</pallas_src>

<mosaic_0001>
module attributes {stable_mosaic.version = 11 : i64} {
  func.func @_contrastive_kernel(%arg0: i32, %arg1: memref<8x32xf32, #tpu.memory_space<vmem>>, %arg2: memref<8x32xf32, #tpu.memory_space<vmem>>, %arg3: memref<8x1xf32, #tpu.memory_space<vmem>>, %arg4: memref<1x1xf32, #tpu.memory_space<smem>>) attributes {dimension_semantics = [#tpu.dimension_semantics<arbitrary>], iteration_bounds = array<i64: 1>, scalar_prefetch = 0 : i64, scratch_operands = 0 : i64, tpu.core_type = #tpu.core_type<tc>, window_params = [{transform_indices = @transform_0, window_bounds = array<i64: 8, 32>}, {transform_indices = @transform_1, window_bounds = array<i64: 8, 32>}, {transform_indices = @transform_2, window_bounds = array<i64: 8, 1>}, {transform_indices = @transform_3, window_bounds = array<i64: 1, 1>}]} {
    %c0 = arith.constant 0 : index
    %c0_0 = arith.constant 0 : index
    %0 = vector.load %arg1[%c0, %c0_0] : memref<8x32xf32, #tpu.memory_space<vmem>>, vector<8x32xf32>
    %c0_1 = arith.constant 0 : index
    %c0_2 = arith.constant 0 : index
    %1 = vector.load %arg2[%c0_1, %c0_2] : memref<8x32xf32, #tpu.memory_space<vmem>>, vector<8x32xf32>
    %2 = arith.subf %0, %1 : vector<8x32xf32>
    %3 = arith.mulf %2, %2 : vector<8x32xf32>
    %cst = arith.constant dense<0.000000e+00> : vector<8xf32>
    %4 = vector.multi_reduction <add>, %3, %cst [1] : vector<8x32xf32> to vector<8xf32>
    %5 = vector.shape_cast %4 : vector<8xf32> to vector<8x1xf32>
    %6 = math.sqrt %5 : vector<8x1xf32>
    %c0_3 = arith.constant 0 : index
    %c0_4 = arith.constant 0 : index
    %7 = vector.load %arg3[%c0_3, %c0_4] : memref<8x1xf32, #tpu.memory_space<vmem>>, vector<8x1xf32>
    %8 = arith.mulf %7, %5 : vector<8x1xf32>
    %cst_5 = arith.constant 1.000000e+00 : f32
    %9 = vector.broadcast %cst_5 : f32 to vector<8x1xf32>
    %10 = arith.subf %9, %6 : vector<8x1xf32>
    %cst_6 = arith.constant 0.000000e+00 : f32
    %11 = vector.broadcast %cst_6 : f32 to vector<8x1xf32>
    %12 = arith.maximumf %10, %11 : vector<8x1xf32>
    %cst_7 = arith.constant 1.000000e+00 : f32
    %13 = vector.broadcast %cst_7 : f32 to vector<8x1xf32>
    %14 = arith.subf %13, %7 : vector<8x1xf32>
    %15 = arith.mulf %14, %12 : vector<8x1xf32>
    %16 = arith.mulf %15, %12 : vector<8x1xf32>
    %17 = arith.addf %8, %16 : vector<8x1xf32>
    %18 = vector.shape_cast %17 : vector<8x1xf32> to vector<1x8x1xf32>
    %cst_8 = arith.constant dense<0.000000e+00> : vector<1xf32>
    %19 = vector.multi_reduction <add>, %18, %cst_8 [1, 2] : vector<1x8x1xf32> to vector<1xf32>
    %20 = vector.shape_cast %19 : vector<1xf32> to vector<1x1x1xf32>
    %21 = vector.extract %20[0, 0, 0] : f32 from vector<1x1x1xf32>
    %c0_i32 = arith.constant 0 : i32
    %22 = arith.cmpi eq, %arg0, %c0_i32 : i32
    %23 = arith.extui %22 : i1 to i32
    %c0_i32_9 = arith.constant 0 : i32
    %24 = arith.cmpi ne, %23, %c0_i32_9 : i32
    scf.if %24 {
      %cst_16 = arith.constant 0.000000e+00 : f32
      %c0_17 = arith.constant 0 : index
      %c0_18 = arith.constant 0 : index
      %31 = memref.load %arg4[%c0_17, %c0_18] : memref<1x1xf32, #tpu.memory_space<smem>>
      memref.store %cst_16, %arg4[%c0_17, %c0_18] : memref<1x1xf32, #tpu.memory_space<smem>>
    } else {
    }
    %c0_10 = arith.constant 0 : index
    %c0_11 = arith.constant 0 : index
    %25 = memref.load %arg4[%c0_10, %c0_11] : memref<1x1xf32, #tpu.memory_space<smem>>
    %26 = arith.addf %25, %21 : f32
    %c0_12 = arith.constant 0 : index
    %c0_13 = arith.constant 0 : index
    %27 = memref.load %arg4[%c0_12, %c0_13] : memref<1x1xf32, #tpu.memory_space<smem>>
    memref.store %26, %arg4[%c0_12, %c0_13] : memref<1x1xf32, #tpu.memory_space<smem>>
    %c0_i32_14 = arith.constant 0 : i32
    %28 = arith.cmpi eq, %arg0, %c0_i32_14 : i32
    %29 = arith.extui %28 : i1 to i32
    %c0_i32_15 = arith.constant 0 : i32
    %30 = arith.cmpi ne, %29, %c0_i32_15 : i32
    scf.if %30 {
      %c0_16 = arith.constant 0 : index
      %c0_17 = arith.constant 0 : index
      %31 = memref.load %arg4[%c0_16, %c0_17] : memref<1x1xf32, #tpu.memory_space<smem>>
      %cst_18 = arith.constant 1.250000e-01 : f32
      %32 = arith.mulf %31, %cst_18 : f32
      %c0_19 = arith.constant 0 : index
      %c0_20 = arith.constant 0 : index
      %33 = memref.load %arg4[%c0_19, %c0_20] : memref<1x1xf32, #tpu.memory_space<smem>>
      memref.store %32, %arg4[%c0_19, %c0_20] : memref<1x1xf32, #tpu.memory_space<smem>>
    } else {
    }
    return
  }
  func.func @transform_0(%arg0: i32) -> (i32, i32) {
    %c0_i32 = arith.constant 0 : i32
    %c0_i32_0 = arith.constant 0 : i32
    return %arg0, %c0_i32 : i32, i32
  }
  func.func @transform_1(%arg0: i32) -> (i32, i32) {
    %c0_i32 = arith.constant 0 : i32
    %c0_i32_0 = arith.constant 0 : i32
    return %arg0, %c0_i32 : i32, i32
  }
  func.func @transform_2(%arg0: i32) -> (i32, i32) {
    %c0_i32 = arith.constant 0 : i32
    %c0_i32_0 = arith.constant 0 : i32
    return %arg0, %c0_i32 : i32, i32
  }
  func.func @transform_3(%arg0: i32) -> (i32, i32) {
    %c0_i32 = arith.constant 0 : i32
    %c0_i32_0 = arith.constant 0 : i32
    %c0_i32_1 = arith.constant 0 : i32
    return %c0_i32, %c0_i32_0 : i32, i32
  }
}

</mosaic_0001>

<llo_original>
// kernel: tpu_custom_call.1
$region0: #{tpu_custom_call.1}
  #allocation0 [shape = 'u32[]', space=smem, size = 0x4, offset = 0x4, fixed_abs, tag = 'smem constant byte address 0x4 - core index']
  #allocation1 [shape = 'u32[144,128]{1,0:T(1,128)}', space=vmem, size = 0x12000, scoped, tag = 'internal scratch']
  %s0 = inlined_call_operand.vmem [shape: f32[8,32], index: 0, kind: input, shape index: {}]
  %s1 = inlined_call_operand.hbm [shape: f32[8,32], index: 1, kind: input, shape index: {}]
  %s2 = inlined_call_operand.vmem [shape: f32[8,1], index: 2, kind: input, shape index: {}]
  %s3 = inlined_call_operand.hbm [shape: f32[1,1], index: 3, kind: output, shape index: {}]
  %s4 = sld [smem:[#allocation0]]
  $region34: #{tpu_custom_call.1} parent=0
    _
  %s6 = ssub.s32 1, %s4
  %s7 = scalar_select 0, %s6, %s4
  $region1: #{tpu_custom_call.1} parent=0
    #allocation2 [shape = 'u8[4096]{0}', space=vmem, size = 0x1000, scoped, tag = 'input window, operand 1, single buffered']
    #allocation3 [shape = 's32[1]{0}', space=sflag, size = 0x4, scoped, tag = 'scoped memory for tpu_custom_call.1']
    #allocation4 [shape = 's32[1]{0}', space=sflag, size = 0x4, scoped, tag = 'scoped memory for tpu_custom_call.1']
    #allocation5 [shape = 'u8[512]{0}', space=smem, size = 0x200, scoped, tag = 'output window, operand 0, single buffered']
    %8 = vsyncpa [#allocation3], 0
    %9 = vsyncpa [#allocation4], 0
    // Predicated region
    $region2: #{tpu_custom_call.1} parent=1 // pred_check
      _
    $region3: #{tpu_custom_call.1} parent=1 // pred_check_branch
      %11 = sbr.rel (0) target = $region5
    $region4: #{tpu_custom_call.1} parent=1 // pred_region
      _
    $region5: #{tpu_custom_call.1} parent=1 // pred_fallthru
      _
    // Predicated region
    $region6: #{tpu_custom_call.1} parent=1 // pred_check
      _
    $region7: #{tpu_custom_call.1} parent=1 // pred_check_branch
      %13 = sbr.rel (0) target = $region9
    $region8: #{tpu_custom_call.1} parent=1 // pred_region
      %s15 = ssub.s32 128, 128
      %16 = vsyncadd [#allocation3], %s15
      %s18 = sshll.u32 [#allocation2], 4
      %s19 = int_to_ptr.vmem [resolvable:$true] %s18
      %21 = dma.hbm_to_vmem [thread:$0]  %s1, 128, %s19, [#allocation3]
    $region9: #{tpu_custom_call.1} parent=1 // pred_fallthru
      _
    // Predicated region
    $region10: #{tpu_custom_call.1} parent=1 // pred_check
      _
    $region11: #{tpu_custom_call.1} parent=1 // pred_check_branch
      %23 = sbr.rel (0) target = $region13
    $region12: #{tpu_custom_call.1} parent=1 // pred_region
      _
    $region13: #{tpu_custom_call.1} parent=1 // pred_fallthru
      _
    // Predicated region
    $region14: #{tpu_custom_call.1} parent=1 // pred_check
      _
    $region15: #{tpu_custom_call.1} parent=1 // pred_check_branch
      %25 = sbr.rel (0) target = $region17
    $region16: #{tpu_custom_call.1} parent=1 // pred_region
      %26 = dma.done [#allocation3], 128
    $region17: #{tpu_custom_call.1} parent=1 // pred_fallthru
      _
    %v27 = vld [vmem:[%s0] sm:$0xff]
    %v28 = vld [vmem:[#allocation2] sm:$0xff]
    %v29 = vsub.f32 %v27, %v28
    %v30 = vmul.f32 %v29, %v29
    %vm31 = vcmask 261120
    %v32 = vsel %vm31, %v30, 0.0
    %33 = vadd.xlane.f32.xlu0 %v32
    %v34 = vpop.xlane.xlu0 %33
    %v35 = vrsqrt.pop %v34
    %v36 = vmul.f32 %v34, %v35
    %vm37 = vcmp.eq.f32.partialorder %v34, inf
    %v38 = vsel %vm37, %v34, %v36
    %vm39 = vcmp.eq.f32.partialorder %v34, 0.0
    %v40 = vand.u32 %v34, 2147483648
    %v41 = vsel %vm39, %v40, %v38
    %v42 = vld [vmem:[%s2] sm:$0xff]
    %v43 = vmul.f32 %v42, %v34
    %v44 = vsub.f32 1.0, %v41
    %v45 = vmax.f32 %v44, 0.0
    %v46 = vsub.f32 1.0, %v42
    %v47 = vmul.f32 %v46, %v45
    %v48 = vmul.f32 %v47, %v45
    %v49 = vadd.f32 %v43, %v48
    %vm50 = vcmask 7168
    %v51 = vsel %vm50, %v49, 0.0
    %52 = vadd.xlane.f32.xlu0 %v51
    %v53 = vpop.xlane.xlu0 %52
    %v54 = vrot.slane %v53, 4
    %v55 = vadd.f32 %v53, %v54
    %v56 = vrot.slane %v55, 2
    %v57 = vadd.f32 %v55, %v56
    %v58 = vrot.slane %v57, 1
    %v59 = vadd.f32 %v57, %v58
    %s60 = vtos %v59
    %p61 = scmp.eq.s32.totalorder 0, 0
    // Predicated region
    $region18: #{tpu_custom_call.1} parent=1 // pred_check
      %p62 = pneg %p61
    $region19: #{tpu_custom_call.1} parent=1 // pred_check_branch
      %64 = sbr.rel (%p62) target = $region21
    $region20: #{tpu_custom_call.1} parent=1 // pred_region
      %s65 = scalar_lea.smem [#allocation5], 0
      %66 = sst [smem:[%s65]] 0.0
    $region21: #{tpu_custom_call.1} parent=1 // pred_fallthru
      _
    %s67 = sld [smem:[#allocation5]]
    %s68 = sadd.f32 %s67, %s60
    %s69 = scalar_lea.smem [#allocation5], 0
    %70 = sst [smem:[%s69]] %s68
    // Predicated region
    $region22: #{tpu_custom_call.1} parent=1 // pred_check
      %p71 = pneg %p61
    $region23: #{tpu_custom_call.1} parent=1 // pred_check_branch
      %73 = sbr.rel (%p71) target = $region25
    $region24: #{tpu_custom_call.1} parent=1 // pred_region
      %s74 = sld [smem:[#allocation5]]
      %s75 = smul.f32 %s74, 0.125
      %76 = sst [smem:[%s69]] %s75
    $region25: #{tpu_custom_call.1} parent=1 // pred_fallthru
      _
    // Predicated region
    $region26: #{tpu_custom_call.1} parent=1 // pred_check
      _
    $region27: #{tpu_custom_call.1} parent=1 // pred_check_branch
      %78 = sbr.rel (0) target = $region29
    $region28: #{tpu_custom_call.1} parent=1 // pred_region
      %s80 = ssub.s32 16, 16
      %81 = vsyncadd [#allocation4], %s80
      %84 = dma.smem_to_hbm [#allocation5], 16, %s3, [#allocation4]
    $region29: #{tpu_custom_call.1} parent=1 // pred_fallthru
      _
    // Predicated region
    $region30: #{tpu_custom_call.1} parent=1 // pred_check
      _
    $region31: #{tpu_custom_call.1} parent=1 // pred_check_branch
      %86 = sbr.rel (0) target = $region33
    $region32: #{tpu_custom_call.1} parent=1 // pred_region
      %87 = dma.done [#allocation4], 16
    $region33: #{tpu_custom_call.1} parent=1 // pred_fallthru
      _
    %88 = sfence
    %89 = vsyncpa [#allocation3], 1
    %90 = vsyncpa [#allocation4], 1

</llo_original>
